<compile_context>
chip_gen: v7x
topology: tpu7x:2x2x1
jax: 0.10.0
libtpu: 0.0.40
codegen_flags: <defaults>
</compile_context>

<pallas_src>
import math
import functools

import jax
import jax.numpy as jnp
from jax.experimental import pallas as pl
from jax.experimental.pallas import tpu as pltpu


def make_pos_embedding(emb_size: int, maxlen: int = 2000) -> jnp.ndarray:
    """Sinusoidal table, identical to the torch __init__ math."""
    den = jnp.exp(
        -jnp.arange(0, emb_size, 2, dtype=jnp.float32) * math.log(10000.0) / emb_size
    )
    pos = jnp.arange(0, maxlen, dtype=jnp.float32).reshape(maxlen, 1)
    pe = jnp.zeros((maxlen, emb_size), jnp.float32)
    pe = pe.at[:, 0::2].set(jnp.sin(pos * den))
    pe = pe.at[:, 1::2].set(jnp.cos(pos * den))
    return pe


# ----------------------------- kernels --------------------------------------


def _pe_add_kernel(x_ref, pos_ref, o_ref):
    # x_ref: (B, tile_r, C), pos_ref: (tile_r, C) — broadcast add over batch.
    o_ref[...] = x_ref[...] + pos_ref[...][None, :, :]


def _pe_add_dropout_kernel(x_ref, pos_ref, bits_ref, o_ref, *, threshold, scale):
    # Inverted dropout with an exact integer threshold:
    #   P(keep) = P(bits >= threshold) = 1 - p   (bits ~ U[0, 2^32))
    y = x_ref[...] + pos_ref[...][None, :, :]
    keep = bits_ref[...] >= jnp.uint32(threshold)
    o_ref[...] = y * (keep.astype(y.dtype) * jnp.asarray(scale, y.dtype))


# ----------------------------- wrapper ---------------------------------------


def positional_encoding(
    token_embedding: jnp.ndarray,
    pos_embedding: jnp.ndarray,
    *,
    dropout_p: float = 0.1,
    training: bool = False,
    rng_key: jax.Array | None = None,
    tile_rows: int | None = None,
    donate_input: bool = False,
):
    B, S, E = token_embedding.shape
    dtype = token_embedding.dtype
    itemsize = jnp.dtype(dtype).itemsize
    pe_slice = pos_embedding[:S].astype(dtype)  # torch: pos_embedding[:token_len]

    # Lane-dense per-batch 2D view (R, C): make the last dim a multiple of 128
    # when possible so output stores are unmasked.
    if E % 128 == 0:
        R, C = S, E
    elif (S * E) % 128 == 0:
        R, C = (S * E) // 128, 128
    else:
        # TODO(synk): last dim < 128 and not reshapeable to lane-dense; stores
        # will be masked (vst.msk). Pad E to a multiple of 128 for best perf.
        R, C = S, E

    x2 = token_embedding.reshape(B, R, C)
    pe2 = pe_slice.reshape(R, C)

    # Row tile: ~2 MiB per x block (double-buffered in/out/bits stays well
    # under 32 MiB VMEM on v5e/v6e/v7x), multiple of 8 (16 for 2-byte dtypes).
    sub = 16 if itemsize == 2 else 8
    if tile_rows is None:
        budget = 2 << 20  # bytes per x block
        tile_rows = budget // max(1, B * C * itemsize)
    tile_rows = max(1, min(int(tile_rows), R))
    if tile_rows < R:
        tile_rows = max(sub, (tile_rows // sub) * sub)
        tile_rows = min(tile_rows, R)
    grid = (pl.cdiv(R, tile_rows),)

    cparams = pltpu.CompilerParams(
        dimension_semantics=("parallel",),   # shards across v7x's 2 TCs
        vmem_limit_bytes=32 << 20,           # explicit; safe on v5e/v6e/v7x
    )
    io_alias = {0: 0} if donate_input else {}

    use_dropout = training and dropout_p > 0.0

    if not use_dropout:
        # Eval path: no dropout inputs / scalar prefetch at all.
        out2 = pl.pallas_call(
            _pe_add_kernel,
            out_shape=jax.ShapeDtypeStruct((B, R, C), dtype),
            grid=grid,
            in_specs=[
                pl.BlockSpec((B, tile_rows, C), lambda i: (0, i, 0)),
                pl.BlockSpec((tile_rows, C), lambda i: (i, 0)),
            ],
            out_specs=pl.BlockSpec((B, tile_rows, C), lambda i: (0, i, 0)),
            compiler_params=cparams,
            input_output_aliases=io_alias,
        )(x2, pe2)
    else:
        assert 0.0 < dropout_p < 1.0, "dropout_p must be in [0, 1)"
        if rng_key is None:
            rng_key = jax.random.PRNGKey(0)
        threshold = min(int(round(dropout_p * (1 << 32))), (1 << 32) - 1)
        scale = 1.0 / (1.0 - dropout_p)
        bits = jax.random.bits(rng_key, (B, R, C), dtype=jnp.uint32)

        kernel = functools.partial(
            _pe_add_dropout_kernel, threshold=threshold, scale=scale
        )
        out2 = pl.pallas_call(
            kernel,
            out_shape=jax.ShapeDtypeStruct((B, R, C), dtype),
            grid=grid,
            in_specs=[
                pl.BlockSpec((B, tile_rows, C), lambda i: (0, i, 0)),
                pl.BlockSpec((tile_rows, C), lambda i: (i, 0)),
                pl.BlockSpec((B, tile_rows, C), lambda i: (0, i, 0)),
            ],
            out_specs=pl.BlockSpec((B, tile_rows, C), lambda i: (0, i, 0)),
            compiler_params=cparams,
            input_output_aliases=io_alias,
        )(x2, pe2, bits)

    return out2.reshape(B, S, E)


# ----------------------------- demo ------------------------------------------

if __name__ == "__main__":
    emb_size, maxlen, dropout = 32, 2000, 0.1
    batch, seq = 2, 8

    pos_embedding = make_pos_embedding(emb_size, maxlen)

    key = jax.random.PRNGKey(0)
    x = jax.random.normal(key, (batch, seq, emb_size), dtype=jnp.float32)

    # Eval mode (dropout == identity), deterministic and checkable.
    out = jax.block_until_ready(
        positional_encoding(x, pos_embedding, dropout_p=dropout, training=False)
    )
    ref = x + pos_embedding[:seq][None, :, :]
    assert out.shape == (batch, seq, emb_size)
    assert jnp.allclose(out, ref, atol=1e-6, rtol=1e-6)

    # Training mode: inverted dropout — every entry is 0 or ref / (1 - p).
    out_tr = jax.block_until_ready(
        positional_encoding(
            x, pos_embedding, dropout_p=dropout, training=True,
            rng_key=jax.random.PRNGKey(123),
        )
    )
    assert out_tr.shape == (batch, seq, emb_size)
    kept = out_tr != 0
    assert jnp.allclose(
        jnp.where(kept, out_tr, 0.0),
        jnp.where(kept, ref / (1.0 - dropout), 0.0),
        atol=1e-5, rtol=1e-5,
    )
    n_drop = int((~kept).sum())
    assert 0 < n_drop < kept.size  # some dropped, not all

    print("KERNEL_OK")
</pallas_src>

<mosaic_0001>
module attributes {stable_mosaic.version = 11 : i64} {
  func.func @_pe_add_kernel(%arg0: i32, %arg1: memref<2x2x128xf32, #tpu.memory_space<vmem>>, %arg2: memref<2x128xf32, #tpu.memory_space<vmem>>, %arg3: memref<2x2x128xf32, #tpu.memory_space<vmem>>) attributes {dimension_semantics = [#tpu.dimension_semantics<parallel>], iteration_bounds = array<i64: 1>, scalar_prefetch = 0 : i64, scratch_operands = 0 : i64, tpu.core_type = #tpu.core_type<tc>, window_params = [{transform_indices = @transform_0, window_bounds = array<i64: 2, 2, 128>}, {transform_indices = @transform_1, window_bounds = array<i64: 2, 128>}, {transform_indices = @transform_2, window_bounds = array<i64: 2, 2, 128>}]} {
    %c0 = arith.constant 0 : index
    %c0_0 = arith.constant 0 : index
    %c0_1 = arith.constant 0 : index
    %0 = vector.load %arg1[%c0, %c0_0, %c0_1] : memref<2x2x128xf32, #tpu.memory_space<vmem>>, vector<2x2x128xf32>
    %c0_2 = arith.constant 0 : index
    %c0_3 = arith.constant 0 : index
    %1 = vector.load %arg2[%c0_2, %c0_3] : memref<2x128xf32, #tpu.memory_space<vmem>>, vector<2x128xf32>
    %2 = vector.shape_cast %1 : vector<2x128xf32> to vector<1x2x128xf32>
    %3 = vector.broadcast %2 : vector<1x2x128xf32> to vector<2x2x128xf32>
    %4 = arith.addf %0, %3 : vector<2x2x128xf32>
    %c0_4 = arith.constant 0 : index
    %c0_5 = arith.constant 0 : index
    %c0_6 = arith.constant 0 : index
    %5 = vector.load %arg3[%c0_4, %c0_5, %c0_6] : memref<2x2x128xf32, #tpu.memory_space<vmem>>, vector<2x2x128xf32>
    tpu.vector_store %arg3[%c0_4, %c0_5, %c0_6], %4 {strides = array<i32>} : memref<2x2x128xf32, #tpu.memory_space<vmem>>, vector<2x2x128xf32>,
    return
  }
  func.func @transform_0(%arg0: i32) -> (i32, i32, i32) {
    %c0_i32 = arith.constant 0 : i32
    %c0_i32_0 = arith.constant 0 : i32
    %c0_i32_1 = arith.constant 0 : i32
    return %c0_i32, %arg0, %c0_i32_0 : i32, i32, i32
  }
  func.func @transform_1(%arg0: i32) -> (i32, i32) {
    %c0_i32 = arith.constant 0 : i32
    %c0_i32_0 = arith.constant 0 : i32
    return %arg0, %c0_i32 : i32, i32
  }
  func.func @transform_2(%arg0: i32) -> (i32, i32, i32) {
    %c0_i32 = arith.constant 0 : i32
    %c0_i32_0 = arith.constant 0 : i32
    %c0_i32_1 = arith.constant 0 : i32
    return %c0_i32, %arg0, %c0_i32_0 : i32, i32, i32
  }
}

</mosaic_0001>

<llo_original>
// kernel: tpu_custom_call.1
$region0: #{tpu_custom_call.1}
  #allocation0 [shape = 'u32[]', space=smem, size = 0x4, offset = 0x4, fixed_abs, tag = 'smem constant byte address 0x4 - core index']
  #allocation1 [shape = 'u32[144,128]{1,0:T(1,128)}', space=vmem, size = 0x12000, scoped, tag = 'internal scratch']
  %s0 = inlined_call_operand.hbm [shape: f32[2,2,128], index: 0, kind: input, shape index: {}]
  %s1 = inlined_call_operand.vmem [shape: f32[2,128], index: 1, kind: input, shape index: {}]
  %s2 = inlined_call_operand.hbm [shape: f32[2,2,128], index: 2, kind: output, shape index: {}]
  %s3 = sld [smem:[#allocation0]]
  $region22: #{tpu_custom_call.1} parent=0
    _
  %s5 = ssub.s32 1, %s3
  %s6 = scalar_select 0, %s5, %s3
  $region1: #{tpu_custom_call.1} parent=0
    #allocation2 [shape = 'u8[2048]{0}', space=vmem, size = 0x800, scoped, tag = 'input window, operand 0, single buffered']
    #allocation3 [shape = 's32[1]{0}', space=sflag, size = 0x4, scoped, tag = 'scoped memory for tpu_custom_call.1']
    #allocation4 [shape = 's32[1]{0}', space=sflag, size = 0x4, scoped, tag = 'scoped memory for tpu_custom_call.1']
    #allocation5 [shape = 'u8[2048]{0}', space=vmem, size = 0x800, scoped, tag = 'output window, operand 0, single buffered']
    %7 = vsyncpa [#allocation3], 0
    %8 = vsyncpa [#allocation4], 0
    // Predicated region
    $region2: #{tpu_custom_call.1} parent=1 // pred_check
      _
    $region3: #{tpu_custom_call.1} parent=1 // pred_check_branch
      %10 = sbr.rel (0) target = $region5
    $region4: #{tpu_custom_call.1} parent=1 // pred_region
      %s12 = ssub.s32 64, 64
      %13 = vsyncadd [#allocation3], %s12
      %s14 = sshll.u32 [#allocation2], 4
      %s15 = int_to_ptr.vmem [resolvable:$true] %s14
      %20 = dma.hbm_to_vmem [thread:$0]  %s0, 64, %s15, [#allocation3], 32, 32, 2
    $region5: #{tpu_custom_call.1} parent=1 // pred_fallthru
      _
    // Predicated region
    $region6: #{tpu_custom_call.1} parent=1 // pred_check
      _
    $region7: #{tpu_custom_call.1} parent=1 // pred_check_branch
      %22 = sbr.rel (0) target = $region9
    $region8: #{tpu_custom_call.1} parent=1 // pred_region
      _
    $region9: #{tpu_custom_call.1} parent=1 // pred_fallthru
      _
    // Predicated region
    $region10: #{tpu_custom_call.1} parent=1 // pred_check
      _
    $region11: #{tpu_custom_call.1} parent=1 // pred_check_branch
      %24 = sbr.rel (0) target = $region13
    $region12: #{tpu_custom_call.1} parent=1 // pred_region
      %25 = dma.done [#allocation3], 64
    $region13: #{tpu_custom_call.1} parent=1 // pred_fallthru
      _
    %v26 = vld [vmem:[#allocation2] sm:$0x3]
    %v27 = vld [vmem:[#allocation2 + $0x2] sm:$0x3]
    %v28 = vld [vmem:[%s1] sm:$0x3]
    %v29 = vadd.f32 %v26, %v28
    %v30 = vadd.f32 %v27, %v28
    %31 = vst [vmem:[#allocation5] sm:$0x3] %v29
    %32 = vst [vmem:[#allocation5 + $0x2] sm:$0x3] %v30
    // Predicated region
    $region14: #{tpu_custom_call.1} parent=1 // pred_check
      _
    $region15: #{tpu_custom_call.1} parent=1 // pred_check_branch
      %34 = sbr.rel (0) target = $region17
    $region16: #{tpu_custom_call.1} parent=1 // pred_region
      %s36 = ssub.s32 64, 64
      %37 = vsyncadd [#allocation4], %s36
      %s38 = sshll.u32 [#allocation5], 4
      %s39 = int_to_ptr.vmem [resolvable:$true] %s38
      %44 = dma.vmem_to_hbm [thread:$0]  %s39, 64, %s2, [#allocation4], 32, 32, 2
    $region17: #{tpu_custom_call.1} parent=1 // pred_fallthru
      _
    // Predicated region
    $region18: #{tpu_custom_call.1} parent=1 // pred_check
      _
    $region19: #{tpu_custom_call.1} parent=1 // pred_check_branch
      %46 = sbr.rel (0) target = $region21
    $region20: #{tpu_custom_call.1} parent=1 // pred_region
      %47 = dma.done [#allocation4], 64
    $region21: #{tpu_custom_call.1} parent=1 // pred_fallthru
      _
    %48 = vsyncpa [#allocation3], 1
    %49 = vsyncpa [#allocation4], 1

</llo_original>
